<compile_context>
chip_gen: v7x
topology: tpu7x:2x2x1
jax: 0.10.0
libtpu: 0.0.40
codegen_flags: <defaults>
</compile_context>

<pallas_src>
import jax
import jax.numpy as jnp
from jax.experimental import pallas as pl
from jax.experimental.pallas import tpu as pltpu

HIDDEN_DIM = 256
LANE = 128


def _round_up(n, m):
    return (n + m - 1) // m * m


# ----------------------------------------------------------------------------
# Fused kernel: (encoder+fc1 folded) matmul -> ReLU -> block-diagonal fc2.
# Biases live in the last row of each packed weight matrix.
# ----------------------------------------------------------------------------
def _sat_fused_kernel(x_ref, w1_ref, w2_ref, o_ref):
    f = x_ref.shape[1]            # feature_dim
    n1 = w1_ref.shape[1]          # P * HIDDEN_DIM

    # fc1 (encoder already folded in):  (bb, F) @ (F, P*H) + bias -> ReLU
    h = jnp.maximum(
        jnp.dot(x_ref[...], w1_ref[:f, :], preferred_element_type=jnp.float32)
        + w1_ref[f:f + 1, :].astype(jnp.float32),
        0.0,
    )

    # fc2, all heads as one block-diagonal dot; lane-dense 128-wide output.
    o_ref[...] = (
        jnp.dot(h.astype(jnp.bfloat16), w2_ref[:n1, :],
                preferred_element_type=jnp.float32)
        + w2_ref[n1:n1 + 1, :].astype(jnp.float32)
    )


def sat_predictor_fused(x_bf16, w1_pack, w2_pack, *, max_block_b=1024):
    B, F = x_bf16.shape
    N2 = w2_pack.shape[1]

    Bp = _round_up(B, 8)
    if Bp != B:
        x_bf16 = jnp.pad(x_bf16, ((0, Bp - B), (0, 0)))
    bb = min(Bp, max_block_b)
    grid = (pl.cdiv(Bp, bb),)

    out = pl.pallas_call(
        _sat_fused_kernel,
        out_shape=jax.ShapeDtypeStruct((Bp, N2), jnp.float32),
        grid_spec=pltpu.PrefetchScalarGridSpec(
            num_scalar_prefetch=0,
            grid=grid,
            in_specs=[
                pl.BlockSpec((bb, F), lambda i: (i, 0)),          # x rows
                pl.BlockSpec(w1_pack.shape, lambda i: (0, 0)),    # whole w1
                pl.BlockSpec(w2_pack.shape, lambda i: (0, 0)),    # whole w2
            ],
            out_specs=pl.BlockSpec((bb, N2), lambda i: (i, 0)),
        ),
        compiler_params=pltpu.CompilerParams(
            dimension_semantics=("parallel",)),
    )(x_bf16, w1_pack, w2_pack)
    return out[:B] if Bp != B else out


@jax.jit
def sat_predictor_forward(x, w1_pack, w2_pack):
    # Returns the fused (B, 128) slab; head i lives at [:, i*F:(i+1)*F].
    return sat_predictor_fused(x.astype(jnp.bfloat16), w1_pack, w2_pack)


# ----------------------------------------------------------------------------
# Parameter setup.  Per-head f32 params kept for the pure-JAX reference;
# packed bf16 forms precomputed once for the kernel.
# ----------------------------------------------------------------------------
def init_params(key, feature_dim, embedding_dim, pred_times):
    F, E, H, P = feature_dim, embedding_dim, HIDDEN_DIM, pred_times
    ks = jax.random.split(key, 6)
    s_enc = 1.0 / jnp.sqrt(F)
    s_fc1 = 1.0 / jnp.sqrt(E)
    s_fc2 = 1.0 / jnp.sqrt(H)

    enc_w = jax.random.uniform(ks[0], (F, E), jnp.float32, -s_enc, s_enc)
    enc_b = jax.random.uniform(ks[1], (1, E), jnp.float32, -s_enc, s_enc)
    w1 = jax.random.uniform(ks[2], (P, E, H), jnp.float32, -s_fc1, s_fc1)
    b1 = jax.random.uniform(ks[3], (P, H), jnp.float32, -s_fc1, s_fc1)
    w2 = jax.random.uniform(ks[4], (P, H, F), jnp.float32, -s_fc2, s_fc2)
    b2 = jax.random.uniform(ks[5], (P, F), jnp.float32, -s_fc2, s_fc2)

    # Fuse heads: fc1 concatenated along the lane axis.
    w1_fused = jnp.transpose(w1, (1, 0, 2)).reshape(E, P * H)   # (E, P*H)
    b1_fused = b1.reshape(1, P * H)

    # Fold the (linear) encoder into fc1 — exact up to f32 rounding.
    w1_enc = enc_w @ w1_fused                                   # (F, P*H)
    b1_enc = enc_b @ w1_fused + b1_fused                        # (1, P*H)

    # Block-diagonal fc2; output lanes zero-padded up to a multiple of 128.
    PF = P * F
    N2 = _round_up(PF, LANE)
    w2_bd = jnp.zeros((P * H, N2), jnp.float32)
    for i in range(P):
        w2_bd = w2_bd.at[i * H:(i + 1) * H, i * F:(i + 1) * F].set(w2[i])
    b2_fused = jnp.zeros((1, N2), jnp.float32).at[:, :PF].set(b2.reshape(1, PF))

    # Pack bias as the last row of each weight matrix; cast to bf16.
    w1_pack = jnp.concatenate([w1_enc, b1_enc], axis=0).astype(jnp.bfloat16)
    w2_pack = jnp.concatenate([w2_bd, b2_fused], axis=0).astype(jnp.bfloat16)

    return dict(
        enc_w=enc_w, enc_b=enc_b, w1=w1, b1=b1, w2=w2, b2=b2,   # f32 reference
        w1_pack=w1_pack, w2_pack=w2_pack,                       # kernel params
    )


def _reference_heads_f32(x, p):
    # Pure-JAX per-head f32 reference mirroring the PyTorch module exactly.
    emb = x @ p["enc_w"] + p["enc_b"]
    outs = []
    for i in range(p["w1"].shape[0]):
        h = jnp.maximum(emb @ p["w1"][i] + p["b1"][i], 0.0)
        outs.append(h @ p["w2"][i] + p["b2"][i])
    return outs


def _reference_fused_bf16(x, w1_pack, w2_pack):
    # Same math/dtypes as the kernel, in plain JAX (tight check).
    F = x.shape[1]
    N1 = w1_pack.shape[1]
    xb = x.astype(jnp.bfloat16)
    h = jnp.maximum(
        jnp.dot(xb, w1_pack[:F], preferred_element_type=jnp.float32)
        + w1_pack[F:F + 1].astype(jnp.float32), 0.0)
    return (jnp.dot(h.astype(jnp.bfloat16), w2_pack[:N1],
                    preferred_element_type=jnp.float32)
            + w2_pack[N1:N1 + 1].astype(jnp.float32))


if __name__ == "__main__":
    feature_dim, embedding_dim, pred_times, batch = 16, 32, 3, 8

    key = jax.random.PRNGKey(0)
    kx, kp = jax.random.split(key)
    x = jax.random.normal(kx, (batch, feature_dim), jnp.float32)
    params = init_params(kp, feature_dim, embedding_dim, pred_times)

    out = sat_predictor_forward(x, params["w1_pack"], params["w2_pack"])
    out = jax.block_until_ready(out)

    PF = pred_times * feature_dim
    N2 = params["w2_pack"].shape[1]
    assert out.shape == (batch, N2)

    # Tight check against a pure-JAX bf16 replica of the fused kernel math.
    ref_fused = _reference_fused_bf16(x, params["w1_pack"], params["w2_pack"])
    assert jnp.allclose(out, ref_fused, atol=2e-3, rtol=2e-3)

    # Semantic check against the per-head f32 module (bf16 weights -> looser).
    refs = _reference_heads_f32(x, params)
    for i, r in enumerate(refs):
        head = out[:, i * feature_dim:(i + 1) * feature_dim]
        assert head.shape == (batch, feature_dim)
        assert jnp.allclose(head, r, atol=5e-2, rtol=5e-2)

    # Zero-padded lanes must be exactly zero.
    assert jnp.all(out[:, PF:] == 0.0)

    print("KERNEL_OK")
</pallas_src>

<mosaic_0001>
module attributes {stable_mosaic.version = 11 : i64} {
  func.func @_sat_fused_kernel(%arg0: i32, %arg1: memref<8x16xbf16, #tpu.memory_space<vmem>>, %arg2: memref<17x768xbf16, #tpu.memory_space<vmem>>, %arg3: memref<769x128xbf16, #tpu.memory_space<vmem>>, %arg4: memref<8x128xf32, #tpu.memory_space<vmem>>) attributes {dimension_semantics = [#tpu.dimension_semantics<parallel>], iteration_bounds = array<i64: 1>, scalar_prefetch = 0 : i64, scratch_operands = 0 : i64, tpu.core_type = #tpu.core_type<tc>, window_params = [{transform_indices = @transform_0, window_bounds = array<i64: 8, 16>}, {pipeline_mode = #tpu.pipeline_mode<synchronous>, transform_indices = @transform_1, window_bounds = array<i64: 17, 768>}, {pipeline_mode = #tpu.pipeline_mode<synchronous>, transform_indices = @transform_2, window_bounds = array<i64: 769, 128>}, {transform_indices = @transform_3, window_bounds = array<i64: 8, 128>}]} {
    %c0 = arith.constant 0 : index
    %c0_0 = arith.constant 0 : index
    %0 = vector.load %arg1[%c0, %c0_0] : memref<8x16xbf16, #tpu.memory_space<vmem>>, vector<8x16xbf16>
    %c0_1 = arith.constant 0 : index
    %c0_2 = arith.constant 0 : index
    %1 = vector.load %arg2[%c0_1, %c0_2] : memref<17x768xbf16, #tpu.memory_space<vmem>>, vector<16x768xbf16>
    %cst = arith.constant dense<0.000000e+00> : vector<8x768xf32>
    %2 = tpu.matmul %0, %1, %cst {dimension_numbers = #tpu.dot_dimension_numbers<[1], [0], [0], [1], [0, 0, 1, 1], [], []>} : vector<8x16xbf16>, vector<16x768xbf16>, vector<8x768xf32> -> vector<8x768xf32>
    %c16 = arith.constant 16 : index
    %c0_3 = arith.constant 0 : index
    %3 = vector.load %arg2[%c16, %c0_3] : memref<17x768xbf16, #tpu.memory_space<vmem>>, vector<1x768xbf16>
    %4 = arith.extf %3 : vector<1x768xbf16> to vector<1x768xf32>
    %5 = vector.broadcast %4 : vector<1x768xf32> to vector<8x768xf32>
    %6 = arith.addf %2, %5 : vector<8x768xf32>
    %cst_4 = arith.constant 0.000000e+00 : f32
    %7 = vector.broadcast %cst_4 : f32 to vector<8x768xf32>
    %8 = arith.maximumf %6, %7 : vector<8x768xf32>
    %9 = arith.truncf %8 : vector<8x768xf32> to vector<8x768xbf16>
    %c0_5 = arith.constant 0 : index
    %c0_6 = arith.constant 0 : index
    %10 = vector.load %arg3[%c0_5, %c0_6] : memref<769x128xbf16, #tpu.memory_space<vmem>>, vector<768x128xbf16>
    %cst_7 = arith.constant dense<0.000000e+00> : vector<8x128xf32>
    %11 = tpu.matmul %9, %10, %cst_7 {dimension_numbers = #tpu.dot_dimension_numbers<[1], [0], [0], [1], [0, 0, 1, 1], [], []>} : vector<8x768xbf16>, vector<768x128xbf16>, vector<8x128xf32> -> vector<8x128xf32>
    %c768 = arith.constant 768 : index
    %c0_8 = arith.constant 0 : index
    %12 = vector.load %arg3[%c768, %c0_8] : memref<769x128xbf16, #tpu.memory_space<vmem>>, vector<1x128xbf16>
    %13 = arith.extf %12 : vector<1x128xbf16> to vector<1x128xf32>
    %14 = vector.broadcast %13 : vector<1x128xf32> to vector<8x128xf32>
    %15 = arith.addf %11, %14 : vector<8x128xf32>
    %c0_9 = arith.constant 0 : index
    %c0_10 = arith.constant 0 : index
    %16 = vector.load %arg4[%c0_9, %c0_10] : memref<8x128xf32, #tpu.memory_space<vmem>>, vector<8x128xf32>
    tpu.vector_store %arg4[%c0_9, %c0_10], %15 {strides = array<i32>} : memref<8x128xf32, #tpu.memory_space<vmem>>, vector<8x128xf32>,
    return
  }
  func.func @transform_0(%arg0: i32) -> (i32, i32) {
    %c0_i32 = arith.constant 0 : i32
    %c0_i32_0 = arith.constant 0 : i32
    return %arg0, %c0_i32 : i32, i32
  }
  func.func @transform_1(%arg0: i32) -> (i32, i32) {
    %c0_i32 = arith.constant 0 : i32
    %c0_i32_0 = arith.constant 0 : i32
    %c0_i32_1 = arith.constant 0 : i32
    return %c0_i32, %c0_i32_0 : i32, i32
  }
  func.func @transform_2(%arg0: i32) -> (i32, i32) {
    %c0_i32 = arith.constant 0 : i32
    %c0_i32_0 = arith.constant 0 : i32
    %c0_i32_1 = arith.constant 0 : i32
    return %c0_i32, %c0_i32_0 : i32, i32
  }
  func.func @transform_3(%arg0: i32) -> (i32, i32) {
    %c0_i32 = arith.constant 0 : i32
    %c0_i32_0 = arith.constant 0 : i32
    return %arg0, %c0_i32 : i32, i32
  }
}

</mosaic_0001>

<llo_original>
// kernel: sat_predictor_forward.1
$region0: #{sat_predictor_forward.1}
  #allocation0 [shape = 'u32[]', space=smem, size = 0x4, offset = 0x4, fixed_abs, tag = 'smem constant byte address 0x4 - core index']
  #allocation1 [shape = 'u32[144,128]{1,0:T(1,128)}', space=vmem, size = 0x12000, scoped, tag = 'internal scratch']
  %s0 = inlined_call_operand.vmem [shape: bf16[8,16], index: 0, kind: input, shape index: {}]
  %s1 = inlined_call_operand.hbm [shape: bf16[17,768], index: 1, kind: input, shape index: {}]
  %s2 = inlined_call_operand.hbm [shape: bf16[769,128], index: 2, kind: input, shape index: {}]
  %s3 = inlined_call_operand.hbm [shape: f32[8,128], index: 3, kind: output, shape index: {}]
  %s4 = sld [smem:[#allocation0]]
  $region30: #{sat_predictor_forward.1} parent=0
    _
  %s6 = ssub.s32 1, %s4
  %s7 = scalar_select 0, %s6, %s4
  $region1: #{sat_predictor_forward.1} parent=0
    #allocation2 [shape = 'u8[36864]{0}', space=vmem, size = 0x9000, scoped, tag = 'input window, operand 1, single buffered']
    #allocation3 [shape = 's32[1]{0}', space=sflag, size = 0x4, scoped, tag = 'scoped memory for sat_predictor_forward.1']
    #allocation4 [shape = 's32[1]{0}', space=sflag, size = 0x4, scoped, tag = 'scoped memory for sat_predictor_forward.1']
    #allocation5 [shape = 'u8[198656]{0}', space=vmem, size = 0x30800, scoped, tag = 'input window, operand 2, single buffered']
    #allocation6 [shape = 's32[1]{0}', space=sflag, size = 0x4, scoped, tag = 'scoped memory for sat_predictor_forward.1']
    #allocation7 [shape = 'u8[4096]{0}', space=vmem, size = 0x1000, scoped, tag = 'output window, operand 0, single buffered']
    %8 = vsyncpa [#allocation3], 0
    %9 = vsyncpa [#allocation6], 0
    %10 = vsyncpa [#allocation4], 0
    // Predicated region
    $region2: #{sat_predictor_forward.1} parent=1 // pred_check
      _
    $region3: #{sat_predictor_forward.1} parent=1 // pred_check_branch
      %12 = sbr.rel (0) target = $region5
    $region4: #{sat_predictor_forward.1} parent=1 // pred_region
      _
    $region5: #{sat_predictor_forward.1} parent=1 // pred_fallthru
      _
    // Predicated region
    $region6: #{sat_predictor_forward.1} parent=1 // pred_check
      _
    $region7: #{sat_predictor_forward.1} parent=1 // pred_check_branch
      %14 = sbr.rel (0) target = $region9
    $region8: #{sat_predictor_forward.1} parent=1 // pred_region
      %s16 = ssub.s32 1152, 1152
      %17 = vsyncadd [#allocation3], %s16
      %s18 = sshll.u32 [#allocation2], 4
      %s19 = int_to_ptr.vmem [resolvable:$true] %s18
      %24 = dma.hbm_to_vmem [thread:$0]  %s1, 1152, %s19, [#allocation3], 384, 384, 24
    $region9: #{sat_predictor_forward.1} parent=1 // pred_fallthru
      _
    // Predicated region
    $region10: #{sat_predictor_forward.1} parent=1 // pred_check
      _
    $region11: #{sat_predictor_forward.1} parent=1 // pred_check_branch
      %26 = sbr.rel (0) target = $region13
    $region12: #{sat_predictor_forward.1} parent=1 // pred_region
      %s28 = ssub.s32 6208, 6208
      %29 = vsyncadd [#allocation6], %s28
      %s30 = sshll.u32 [#allocation5], 4
      %s31 = int_to_ptr.vmem [resolvable:$true] %s30
      %36 = dma.hbm_to_vmem [thread:$0]  %s2, 6208, %s31, [#allocation6], 64, 64, 4
    $region13: #{sat_predictor_forward.1} parent=1 // pred_fallthru
      _
    // Predicated region
    $region14: #{sat_predictor_forward.1} parent=1 // pred_check
      _
    $region15: #{sat_predictor_forward.1} parent=1 // pred_check_branch
      %38 = sbr.rel (0) target = $region17
    $region16: #{sat_predictor_forward.1} parent=1 // pred_region
      %39 = dma.done [#allocation3], 1152
    $region17: #{sat_predictor_forward.1} parent=1 // pred_fallthru
      _
    // Predicated region
    $region18: #{sat_predictor_forward.1} parent=1 // pred_check
      _
    $region19: #{sat_predictor_forward.1} parent=1 // pred_check_branch
      %41 = sbr.rel (0) target = $region21
    $region20: #{sat_predictor_forward.1} parent=1 // pred_region
      %42 = dma.done [#allocation6], 6208
    $region21: #{sat_predictor_forward.1} parent=1 // pred_fallthru
      _
    %v44 = vld [vmem:[%s0] sm:$0xf]
    %v45 = vld [vmem:[#allocation2] sm:$0xff]
    %v46 = vld [vmem:[#allocation2 + $0x8] sm:$0xff]
    %v47 = vld [vmem:[#allocation2 + $0x10] sm:$0xff]
    %v48 = vld [vmem:[#allocation2 + $0x18] sm:$0xff]
    %v49 = vld [vmem:[#allocation2 + $0x20] sm:$0xff]
    %v50 = vld [vmem:[#allocation2 + $0x28] sm:$0xff]
    %v51 = vld [vmem:[#allocation2 + $0x30] sm:$0x11]
    %v52 = vld [vmem:[#allocation2 + $0x38] sm:$0x11]
    %v53 = vld [vmem:[#allocation2 + $0x40] sm:$0x11]
    %v54 = vunpack.c.l.bf16 %v51
    %v55 = vunpack.c.h.bf16 %v51
    %v56 = vunpack.c.l.bf16 %v52
    %v57 = vunpack.c.h.bf16 %v52
    %v58 = vunpack.c.l.bf16 %v53
    %v59 = vunpack.c.h.bf16 %v53
    %v60 = vlaneseq
    %v61 = vshrl.u32 %v60, 7
    %v62 = vsub.s32 0, %v61
    %v63 = vrot.slane %v54, %v62
    %v64 = vlaneseq
    %v65 = vshrl.u32 %v64, 7
    %v66 = vsub.s32 0, %v65
    %v67 = vrot.slane %v55, %v66
    %v68 = vlaneseq
    %v69 = vshrl.u32 %v68, 7
    %v70 = vsub.s32 0, %v69
    %v71 = vrot.slane %v56, %v70
    %v72 = vlaneseq
    %v73 = vshrl.u32 %v72, 7
    %v74 = vsub.s32 0, %v73
    %v75 = vrot.slane %v57, %v74
    %v76 = vlaneseq
    %v77 = vshrl.u32 %v76, 7
    %v78 = vsub.s32 0, %v77
    %v79 = vrot.slane %v58, %v78
    %v80 = vlaneseq
    %v81 = vshrl.u32 %v80, 7
    %v82 = vsub.s32 0, %v81
    %v83 = vrot.slane %v59, %v82
    %v90 = vunpack.c.l.b16 %v45
    %v91 = vunpack.c.h.b16 %v45
    %v92 = vunpack.c.l.b16 %v46
    %v93 = vunpack.c.h.b16 %v46
    %v94 = vunpack.c.l.b16 %v47
    %v95 = vunpack.c.h.b16 %v47
    %v96 = vunpack.c.l.b16 %v48
    %v97 = vunpack.c.h.b16 %v48
    %v98 = vunpack.c.l.b16 %v49
    %v99 = vunpack.c.h.b16 %v49
    %v100 = vunpack.c.l.b16 %v50
    %v101 = vunpack.c.h.b16 %v50
    %v102 = vpack.c.b16 %v96, %v90
    %v103 = vpack.c.b16 %v97, %v91
    %v104 = vpack.c.b16 %v98, %v92
    %v105 = vpack.c.b16 %v99, %v93
    %v106 = vpack.c.b16 %v100, %v94
    %v107 = vpack.c.b16 %v101, %v95
    %vm114 = vcmask 130048
    %v116 = vsel %vm114, %v44, 0
    %118 = vmatprep.subr.bf16.mxu0 %v103
    %119 = vmatpush1.bf16.msra.mxu0 %v102
    %120 = vmatprep.subr.bf16.mxu0 0
    %121 = vmatpush1.bf16.msra.mxu0 0
    %122 = vmatprep.subr.bf16.mxu0 0
    %123 = vmatpush1.bf16.msra.mxu0 0
    %124 = vmatprep.subr.bf16.mxu0 0
    %125 = vmatpush1.bf16.msra.mxu0 0
    %126 = vmatprep.subr.bf16.mxu0 0
    %127 = vmatpush1.bf16.msra.mxu0 0
    %128 = vmatprep.subr.bf16.mxu0 0
    %129 = vmatpush1.bf16.msra.mxu0 0
    %130 = vmatprep.subr.bf16.mxu0 0
    %131 = vmatpush1.bf16.msra.mxu0 0
    %132 = vmatprep.subr.bf16.mxu0 0
    %133 = vmatpush1.bf16.msra.mxu0 0
    %134 = vmatprep.subr.bf16.mxu0 0
    %135 = vmatpush1.bf16.msra.mxu0 0
    %136 = vmatprep.subr.bf16.mxu0 0
    %137 = vmatpush1.bf16.msra.mxu0 0
    %138 = vmatprep.subr.bf16.mxu0 0
    %139 = vmatpush1.bf16.msra.mxu0 0
    %140 = vmatprep.subr.bf16.mxu0 0
    %141 = vmatpush1.bf16.msra.mxu0 0
    %142 = vmatprep.subr.bf16.mxu0 0
    %143 = vmatpush1.bf16.msra.mxu0 0
    %144 = vmatprep.subr.bf16.mxu0 0
    %145 = vmatpush1.bf16.msra.mxu0 0
    %146 = vmatprep.subr.bf16.mxu0 0
    %147 = vmatpush1.bf16.msra.mxu0 0
    %148 = vmatprep.subr.bf16.mxu0 0
    %149 = vmatpush1.bf16.msra.mxu0 0
    %150 = vmatprep.mubr.bf16.mxu0 0
    %151 = vmatmul.mubr.bf16.gmra.mrb[0].mxu0 %v116
    %v152 = vpop.f32.mrb[0].mxu0
    %v153 = vadd.f32 %v63, %v152
    %v154 = vpop.f32.mrb[0].mxu0
    %v155 = vadd.f32 %v67, %v154
    %v156 = vpop.f32.mrb[0].mxu0
    %v157 = vpop.f32.mrb[0].mxu0
    %158 = vdwg.mxu0
    %159 = vmatprep.subr.bf16.mxu0 %v105
    %160 = vmatpush1.bf16.msra.mxu0 %v104
    %161 = vmatprep.subr.bf16.mxu0 0
    %162 = vmatpush1.bf16.msra.mxu0 0
    %163 = vmatprep.subr.bf16.mxu0 0
    %164 = vmatpush1.bf16.msra.mxu0 0
    %165 = vmatprep.subr.bf16.mxu0 0
    %166 = vmatpush1.bf16.msra.mxu0 0
    %167 = vmatprep.subr.bf16.mxu0 0
    %168 = vmatpush1.bf16.msra.mxu0 0
    %169 = vmatprep.subr.bf16.mxu0 0
    %170 = vmatpush1.bf16.msra.mxu0 0
    %171 = vmatprep.subr.bf16.mxu0 0
    %172 = vmatpush1.bf16.msra.mxu0 0
    %173 = vmatprep.subr.bf16.mxu0 0
    %174 = vmatpush1.bf16.msra.mxu0 0
    %175 = vmatprep.subr.bf16.mxu0 0
    %176 = vmatpush1.bf16.msra.mxu0 0
    %177 = vmatprep.subr.bf16.mxu0 0
    %178 = vmatpush1.bf16.msra.mxu0 0
    %179 = vmatprep.subr.bf16.mxu0 0
    %180 = vmatpush1.bf16.msra.mxu0 0
    %181 = vmatprep.subr.bf16.mxu0 0
    %182 = vmatpush1.bf16.msra.mxu0 0
    %183 = vmatprep.subr.bf16.mxu0 0
    %184 = vmatpush1.bf16.msra.mxu0 0
    %185 = vmatprep.subr.bf16.mxu0 0
    %186 = vmatpush1.bf16.msra.mxu0 0
    %187 = vmatprep.subr.bf16.mxu0 0
    %188 = vmatpush1.bf16.msra.mxu0 0
    %189 = vmatprep.subr.bf16.mxu0 0
    %190 = vmatpush1.bf16.msra.mxu0 0
    %191 = vmatprep.mubr.bf16.mxu0 0
    %192 = vmatmul.mubr.bf16.gmra.mrb[0].mxu0 %v116
    %v193 = vpop.f32.mrb[0].mxu0
    %v194 = vadd.f32 %v71, %v193
    %v195 = vpop.f32.mrb[0].mxu0
    %v196 = vadd.f32 %v75, %v195
    %v197 = vpop.f32.mrb[0].mxu0
    %v198 = vpop.f32.mrb[0].mxu0
    %199 = vdwg.mxu0
    %200 = vmatprep.subr.bf16.mxu0 %v107
    %201 = vmatpush1.bf16.msra.mxu0 %v106
    %202 = vmatprep.subr.bf16.mxu0 0
    %203 = vmatpush1.bf16.msra.mxu0 0
    %204 = vmatprep.subr.bf16.mxu0 0
    %205 = vmatpush1.bf16.msra.mxu0 0
    %206 = vmatprep.subr.bf16.mxu0 0
    %207 = vmatpush1.bf16.msra.mxu0 0
    %208 = vmatprep.subr.bf16.mxu0 0
    %209 = vmatpush1.bf16.msra.mxu0 0
    %210 = vmatprep.subr.bf16.mxu0 0
    %211 = vmatpush1.bf16.msra.mxu0 0
    %212 = vmatprep.subr.bf16.mxu0 0
    %213 = vmatpush1.bf16.msra.mxu0 0
    %214 = vmatprep.subr.bf16.mxu0 0
    %215 = vmatpush1.bf16.msra.mxu0 0
    %216 = vmatprep.subr.bf16.mxu0 0
    %217 = vmatpush1.bf16.msra.mxu0 0
    %218 = vmatprep.subr.bf16.mxu0 0
    %219 = vmatpush1.bf16.msra.mxu0 0
    %220 = vmatprep.subr.bf16.mxu0 0
    %221 = vmatpush1.bf16.msra.mxu0 0
    %222 = vmatprep.subr.bf16.mxu0 0
    %223 = vmatpush1.bf16.msra.mxu0 0
    %224 = vmatprep.subr.bf16.mxu0 0
    %225 = vmatpush1.bf16.msra.mxu0 0
    %226 = vmatprep.subr.bf16.mxu0 0
    %227 = vmatpush1.bf16.msra.mxu0 0
    %228 = vmatprep.subr.bf16.mxu0 0
    %229 = vmatpush1.bf16.msra.mxu0 0
    %230 = vmatprep.subr.bf16.mxu0 0
    %231 = vmatpush1.bf16.msra.mxu0 0
    %232 = vmatprep.mubr.bf16.mxu0 0
    %233 = vmatmul.mubr.bf16.gmra.mrb[0].mxu0 %v116
    %v234 = vpop.f32.mrb[0].mxu0
    %v235 = vadd.f32 %v79, %v234
    %v236 = vpop.f32.mrb[0].mxu0
    %v237 = vadd.f32 %v83, %v236
    %v238 = vpop.f32.mrb[0].mxu0
    %v239 = vpop.f32.mrb[0].mxu0
    %240 = vdwg.mxu0
    %v241 = vmax.f32 %v153, 0.0
    %v242 = vmax.f32 %v155, 0.0
    %v243 = vmax.f32 %v194, 0.0
    %v244 = vmax.f32 %v196, 0.0
    %v245 = vmax.f32 %v235, 0.0
    %v246 = vmax.f32 %v237, 0.0
    %v247 = vpack.c.bf16 %v241, %v241
    %v248 = vpack.c.bf16 %v242, %v242
    %v249 = vpack.c.bf16 %v243, %v243
    %v250 = vpack.c.bf16 %v244, %v244
    %v251 = vpack.c.bf16 %v245, %v245
    %v252 = vpack.c.bf16 %v246, %v246
    %v253 = vld [vmem:[#allocation5] sm:$0xf]
    %v254 = vld [vmem:[#allocation5 + $0x4] sm:$0xf]
    %v255 = vld [vmem:[#allocation5 + $0x8] sm:$0xf]
    %v256 = vld [vmem:[#allocation5 + $0xc] sm:$0xf]
    %v257 = vld [vmem:[#allocation5 + $0x10] sm:$0xf]
    %v258 = vld [vmem:[#allocation5 + $0x14] sm:$0xf]
    %v259 = vld [vmem:[#allocation5 + $0x18] sm:$0xf]
    %v260 = vld [vmem:[#allocation5 + $0x1c] sm:$0xf]
    %v261 = vld [vmem:[#allocation5 + $0x20] sm:$0xf]
    %v262 = vld [vmem:[#allocation5 + $0x24] sm:$0xf]
    %v263 = vld [vmem:[#allocation5 + $0x28] sm:$0xf]
    %v264 = vld [vmem:[#allocation5 + $0x2c] sm:$0xf]
    %v265 = vld [vmem:[#allocation5 + $0x30] sm:$0xf]
    %v266 = vld [vmem:[#allocation5 + $0x34] sm:$0xf]
    %v267 = vld [vmem:[#allocation5 + $0x38] sm:$0xf]
    %v268 = vld [vmem:[#allocation5 + $0x3c] sm:$0xf]
    %v269 = vld [vmem:[#allocation5 + $0x40] sm:$0xf]
    %v270 = vld [vmem:[#allocation5 + $0x44] sm:$0xf]
    %v271 = vld [vmem:[#allocation5 + $0x48] sm:$0xf]
    %v272 = vld [vmem:[#allocation5 + $0x4c] sm:$0xf]
    %v273 = vld [vmem:[#allocation5 + $0x50] sm:$0xf]
    %v274 = vld [vmem:[#allocation5 + $0x54] sm:$0xf]
    %v275 = vld [vmem:[#allocation5 + $0x58] sm:$0xf]
    %v276 = vld [vmem:[#allocation5 + $0x5c] sm:$0xf]
    %v277 = vld [vmem:[#allocation5 + $0x60] sm:$0xf]
    %v278 = vld [vmem:[#allocation5 + $0x64] sm:$0xf]
    %v279 = vld [vmem:[#allocation5 + $0x68] sm:$0xf]
    %v280 = vld [vmem:[#allocation5 + $0x6c] sm:$0xf]
    %v281 = vld [vmem:[#allocation5 + $0x70] sm:$0xf]
    %v282 = vld [vmem:[#allocation5 + $0x74] sm:$0xf]
    %v283 = vld [vmem:[#allocation5 + $0x78] sm:$0xf]
    %v284 = vld [vmem:[#allocation5 + $0x7c] sm:$0xf]
    %v285 = vld [vmem:[#allocation5 + $0x80] sm:$0xf]
    %v286 = vld [vmem:[#allocation5 + $0x84] sm:$0xf]
    %v287 = vld [vmem:[#allocation5 + $0x88] sm:$0xf]
    %v288 = vld [vmem:[#allocation5 + $0x8c] sm:$0xf]
    %v289 = vld [vmem:[#allocation5 + $0x90] sm:$0xf]
    %v290 = vld [vmem:[#allocation5 + $0x94] sm:$0xf]
    %v291 = vld [vmem:[#allocation5 + $0x98] sm:$0xf]
    %v292 = vld [vmem:[#allocation5 + $0x9c] sm:$0xf]
    %v293 = vld [vmem:[#allocation5 + $0xa0] sm:$0xf]
    %v294 = vld [vmem:[#allocation5 + $0xa4] sm:$0xf]
    %v295 = vld [vmem:[#allocation5 + $0xa8] sm:$0xf]
    %v296 = vld [vmem:[#allocation5 + $0xac] sm:$0xf]
    %v297 = vld [vmem:[#allocation5 + $0xb0] sm:$0xf]
    %v298 = vld [vmem:[#allocation5 + $0xb4] sm:$0xf]
    %v299 = vld [vmem:[#allocation5 + $0xb8] sm:$0xf]
    %v300 = vld [vmem:[#allocation5 + $0xbc] sm:$0xf]
    %v301 = vld [vmem:[#allocation5 + $0xc0] sm:$0xf]
    %v302 = vld [vmem:[#allocation5 + $0xc4] sm:$0xf]
    %v303 = vld [vmem:[#allocation5 + $0xc8] sm:$0xf]
    %v304 = vld [vmem:[#allocation5 + $0xcc] sm:$0xf]
    %v305 = vld [vmem:[#allocation5 + $0xd0] sm:$0xf]
    %v306 = vld [vmem:[#allocation5 + $0xd4] sm:$0xf]
    %v307 = vld [vmem:[#allocation5 + $0xd8] sm:$0xf]
    %v308 = vld [vmem:[#allocation5 + $0xdc] sm:$0xf]
    %v309 = vld [vmem:[#allocation5 + $0xe0] sm:$0xf]
    %v310 = vld [vmem:[#allocation5 + $0xe4] sm:$0xf]
    %v311 = vld [vmem:[#allocation5 + $0xe8] sm:$0xf]
    %v312 = vld [vmem:[#allocation5 + $0xec] sm:$0xf]
    %v313 = vld [vmem:[#allocation5 + $0xf0] sm:$0xf]
    %v314 = vld [vmem:[#allocation5 + $0xf4] sm:$0xf]
    %v315 = vld [vmem:[#allocation5 + $0xf8] sm:$0xf]
    %v316 = vld [vmem:[#allocation5 + $0xfc] sm:$0xf]
    %v317 = vld [vmem:[#allocation5 + $0x100] sm:$0xf]
    %v318 = vld [vmem:[#allocation5 + $0x104] sm:$0xf]
    %v319 = vld [vmem:[#allocation5 + $0x108] sm:$0xf]
    %v320 = vld [vmem:[#allocation5 + $0x10c] sm:$0xf]
    %v321 = vld [vmem:[#allocation5 + $0x110] sm:$0xf]
    %v322 = vld [vmem:[#allocation5 + $0x114] sm:$0xf]
    %v323 = vld [vmem:[#allocation5 + $0x118] sm:$0xf]
    %v324 = vld [vmem:[#allocation5 + $0x11c] sm:$0xf]
    %v325 = vld [vmem:[#allocation5 + $0x120] sm:$0xf]
    %v326 = vld [vmem:[#allocation5 + $0x124] sm:$0xf]
    %v327 = vld [vmem:[#allocation5 + $0x128] sm:$0xf]
    %v328 = vld [vmem:[#allocation5 + $0x12c] sm:$0xf]
    %v329 = vld [vmem:[#allocation5 + $0x130] sm:$0xf]
    %v330 = vld [vmem:[#allocation5 + $0x134] sm:$0xf]
    %v331 = vld [vmem:[#allocation5 + $0x138] sm:$0xf]
    %v332 = vld [vmem:[#allocation5 + $0x13c] sm:$0xf]
    %v333 = vld [vmem:[#allocation5 + $0x140] sm:$0xf]
    %v334 = vld [vmem:[#allocation5 + $0x144] sm:$0xf]
    %v335 = vld [vmem:[#allocation5 + $0x148] sm:$0xf]
    %v336 = vld [vmem:[#allocation5 + $0x14c] sm:$0xf]
    %v337 = vld [vmem:[#allocation5 + $0x150] sm:$0xf]
    %v338 = vld [vmem:[#allocation5 + $0x154] sm:$0xf]
    %v339 = vld [vmem:[#allocation5 + $0x158] sm:$0xf]
    %v340 = vld [vmem:[#allocation5 + $0x15c] sm:$0xf]
    %v341 = vld [vmem:[#allocation5 + $0x160] sm:$0xf]
    %v342 = vld [vmem:[#allocation5 + $0x164] sm:$0xf]
    %v343 = vld [vmem:[#allocation5 + $0x168] sm:$0xf]
    %v344 = vld [vmem:[#allocation5 + $0x16c] sm:$0xf]
    %v345 = vld [vmem:[#allocation5 + $0x170] sm:$0xf]
    %v346 = vld [vmem:[#allocation5 + $0x174] sm:$0xf]
    %v347 = vld [vmem:[#allocation5 + $0x178] sm:$0xf]
    %v348 = vld [vmem:[#allocation5 + $0x17c] sm:$0xf]
    %v349 = vld [vmem:[#allocation5 + $0x180] sm:$0x1]
    %v350 = vunpack.c.l.bf16 %v349
    %v351 = vlaneseq
    %v352 = vshrl.u32 %v351, 7
    %v353 = vsub.s32 0, %v352
    %v354 = vrot.slane %v350, %v353
    %v451 = vunpack.c.l.b16 %v253
    %v452 = vunpack.c.l.b16 %v254
    %v453 = vunpack.c.l.b16 %v255
    %v454 = vunpack.c.l.b16 %v256
    %v455 = vunpack.c.l.b16 %v257
    %v456 = vunpack.c.l.b16 %v258
    %v457 = vunpack.c.l.b16 %v259
    %v458 = vunpack.c.l.b16 %v260
    %v459 = vunpack.c.l.b16 %v261
    %v460 = vunpack.c.l.b16 %v262
    %v461 = vunpack.c.l.b16 %v263
    %v462 = vunpack.c.l.b16 %v264
    %v463 = vunpack.c.l.b16 %v265
    %v464 = vunpack.c.l.b16 %v266
    %v465 = vunpack.c.l.b16 %v267
    %v466 = vunpack.c.l.b16 %v268
    %v467 = vunpack.c.l.b16 %v269
    %v468 = vunpack.c.l.b16 %v270
    %v469 = vunpack.c.l.b16 %v271
    %v470 = vunpack.c.l.b16 %v272
    %v471 = vunpack.c.l.b16 %v273
    %v472 = vunpack.c.l.b16 %v274
    %v473 = vunpack.c.l.b16 %v275
    %v474 = vunpack.c.l.b16 %v276
    %v475 = vunpack.c.l.b16 %v277
    %v476 = vunpack.c.l.b16 %v278
    %v477 = vunpack.c.l.b16 %v279
    %v478 = vunpack.c.l.b16 %v280
    %v479 = vunpack.c.l.b16 %v281
    %v480 = vunpack.c.l.b16 %v282
    %v481 = vunpack.c.l.b16 %v283
    %v482 = vunpack.c.l.b16 %v284
    %v483 = vunpack.c.l.b16 %v285
    %v484 = vunpack.c.l.b16 %v286
    %v485 = vunpack.c.l.b16 %v287
    %v486 = vunpack.c.l.b16 %v288
    %v487 = vunpack.c.l.b16 %v289
    %v488 = vunpack.c.l.b16 %v290
    %v489 = vunpack.c.l.b16 %v291
    %v490 = vunpack.c.l.b16 %v292
    %v491 = vunpack.c.l.b16 %v293
    %v492 = vunpack.c.l.b16 %v294
    %v493 = vunpack.c.l.b16 %v295
    %v494 = vunpack.c.l.b16 %v296
    %v495 = vunpack.c.l.b16 %v297
    %v496 = vunpack.c.l.b16 %v298
    %v497 = vunpack.c.l.b16 %v299
    %v498 = vunpack.c.l.b16 %v300
    %v499 = vunpack.c.l.b16 %v301
    %v500 = vunpack.c.l.b16 %v302
    %v501 = vunpack.c.l.b16 %v303
    %v502 = vunpack.c.l.b16 %v304
    %v503 = vunpack.c.l.b16 %v305
    %v504 = vunpack.c.l.b16 %v306
    %v505 = vunpack.c.l.b16 %v307
    %v506 = vunpack.c.l.b16 %v308
    %v507 = vunpack.c.l.b16 %v309
    %v508 = vunpack.c.l.b16 %v310
    %v509 = vunpack.c.l.b16 %v311
    %v510 = vunpack.c.l.b16 %v312
    %v511 = vunpack.c.l.b16 %v313
    %v512 = vunpack.c.l.b16 %v314
    %v513 = vunpack.c.l.b16 %v315
    %v514 = vunpack.c.l.b16 %v316
    %v515 = vunpack.c.l.b16 %v317
    %v516 = vunpack.c.l.b16 %v318
    %v517 = vunpack.c.l.b16 %v319
    %v518 = vunpack.c.l.b16 %v320
    %v519 = vunpack.c.l.b16 %v321
    %v520 = vunpack.c.l.b16 %v322
    %v521 = vunpack.c.l.b16 %v323
    %v522 = vunpack.c.l.b16 %v324
    %v523 = vunpack.c.l.b16 %v325
    %v524 = vunpack.c.l.b16 %v326
    %v525 = vunpack.c.l.b16 %v327
    %v526 = vunpack.c.l.b16 %v328
    %v527 = vunpack.c.l.b16 %v329
    %v528 = vunpack.c.l.b16 %v330
    %v529 = vunpack.c.l.b16 %v331
    %v530 = vunpack.c.l.b16 %v332
    %v531 = vunpack.c.l.b16 %v333
    %v532 = vunpack.c.l.b16 %v334
    %v533 = vunpack.c.l.b16 %v335
    %v534 = vunpack.c.l.b16 %v336
    %v535 = vunpack.c.l.b16 %v337
    %v536 = vunpack.c.l.b16 %v338
    %v537 = vunpack.c.l.b16 %v339
    %v538 = vunpack.c.l.b16 %v340
    %v539 = vunpack.c.l.b16 %v341
    %v540 = vunpack.c.l.b16 %v342
    %v541 = vunpack.c.l.b16 %v343
    %v542 = vunpack.c.l.b16 %v344
    %v543 = vunpack.c.l.b16 %v345
    %v544 = vunpack.c.l.b16 %v346
    %v545 = vunpack.c.l.b16 %v347
    %v546 = vunpack.c.l.b16 %v348
    %v547 = vpack.c.b16 %v452, %v451
    %v548 = vpack.c.b16 %v454, %v453
    %v549 = vpack.c.b16 %v456, %v455
    %v550 = vpack.c.b16 %v458, %v457
    %v551 = vpack.c.b16 %v460, %v459
    %v552 = vpack.c.b16 %v462, %v461
    %v553 = vpack.c.b16 %v464, %v463
    %v554 = vpack.c.b16 %v466, %v465
    %v555 = vpack.c.b16 %v468, %v467
    %v556 = vpack.c.b16 %v470, %v469
    %v557 = vpack.c.b16 %v472, %v471
    %v558 = vpack.c.b16 %v474, %v473
    %v559 = vpack.c.b16 %v476, %v475
    %v560 = vpack.c.b16 %v478, %v477
    %v561 = vpack.c.b16 %v480, %v479
    %v562 = vpack.c.b16 %v482, %v481
    %v563 = vpack.c.b16 %v484, %v483
    %v564 = vpack.c.b16 %v486, %v485
    %v565 = vpack.c.b16 %v488, %v487
    %v566 = vpack.c.b16 %v490, %v489
    %v567 = vpack.c.b16 %v492, %v491
    %v568 = vpack.c.b16 %v494, %v493
    %v569 = vpack.c.b16 %v496, %v495
    %v570 = vpack.c.b16 %v498, %v497
    %v571 = vpack.c.b16 %v500, %v499
    %v572 = vpack.c.b16 %v502, %v501
    %v573 = vpack.c.b16 %v504, %v503
    %v574 = vpack.c.b16 %v506, %v505
    %v575 = vpack.c.b16 %v508, %v507
    %v576 = vpack.c.b16 %v510, %v509
    %v577 = vpack.c.b16 %v512, %v511
    %v578 = vpack.c.b16 %v514, %v513
    %v579 = vpack.c.b16 %v516, %v515
    %v580 = vpack.c.b16 %v518, %v517
    %v581 = vpack.c.b16 %v520, %v519
    %v582 = vpack.c.b16 %v522, %v521
    %v583 = vpack.c.b16 %v524, %v523
    %v584 = vpack.c.b16 %v526, %v525
    %v585 = vpack.c.b16 %v528, %v527
    %v586 = vpack.c.b16 %v530, %v529
    %v587 = vpack.c.b16 %v532, %v531
    %v588 = vpack.c.b16 %v534, %v533
    %v589 = vpack.c.b16 %v536, %v535
    %v590 = vpack.c.b16 %v538, %v537
    %v591 = vpack.c.b16 %v540, %v539
    %v592 = vpack.c.b16 %v542, %v541
    %v593 = vpack.c.b16 %v544, %v543
    %v594 = vpack.c.b16 %v546, %v545
    %643 = vmatprep.subr.bf16.mxu0 0
    %644 = vmatpush1.bf16.msra.mxu0 %v547
    %645 = vmatprep.subr.bf16.mxu0 0
    %646 = vmatpush1.bf16.msra.mxu0 %v548
    %647 = vmatprep.subr.bf16.mxu0 0
    %648 = vmatpush1.bf16.msra.mxu0 %v549
    %649 = vmatprep.subr.bf16.mxu0 0
    %650 = vmatpush1.bf16.msra.mxu0 %v550
    %651 = vmatprep.subr.bf16.mxu0 0
    %652 = vmatpush1.bf16.msra.mxu0 %v551
    %653 = vmatprep.subr.bf16.mxu0 0
    %654 = vmatpush1.bf16.msra.mxu0 %v552
    %655 = vmatprep.subr.bf16.mxu0 0
    %656 = vmatpush1.bf16.msra.mxu0 %v553
    %657 = vmatprep.subr.bf16.mxu0 0
    %658 = vmatpush1.bf16.msra.mxu0 %v554
    %659 = vmatprep.subr.bf16.mxu0 0
    %660 = vmatpush1.bf16.msra.mxu0 %v555
    %661 = vmatprep.subr.bf16.mxu0 0
    %662 = vmatpush1.bf16.msra.mxu0 %v556
    %663 = vmatprep.subr.bf16.mxu0 0
    %664 = vmatpush1.bf16.msra.mxu0 %v557
    %665 = vmatprep.subr.bf16.mxu0 0
    %666 = vmatpush1.bf16.msra.mxu0 %v558
    %667 = vmatprep.subr.bf16.mxu0 0
    %668 = vmatpush1.bf16.msra.mxu0 %v559
    %669 = vmatprep.subr.bf16.mxu0 0
    %670 = vmatpush1.bf16.msra.mxu0 %v560
    %671 = vmatprep.subr.bf16.mxu0 0
    %672 = vmatpush1.bf16.msra.mxu0 %v561
    %673 = vmatprep.subr.bf16.mxu0 0
    %674 = vmatpush1.bf16.msra.mxu0 %v562
    %675 = vmatprep.mubr.bf16.mxu0 %v248
    %676 = vmatmul.mubr.bf16.gmra.mrb[0].mxu0 %v247
    %v677 = vpop.f32.mrb[0].mxu0
    %v678 = vadd.f32 %v354, %v677
    %v679 = vpop.f32.mrb[0].mxu0
    %v680 = vpop.f32.mrb[0].mxu0
    %v681 = vpop.f32.mrb[0].mxu0
    %682 = vdwg.mxu0
    %683 = vmatprep.subr.bf16.mxu0 0
    %684 = vmatpush1.bf16.msra.mxu0 %v563
    %685 = vmatprep.subr.bf16.mxu0 0
    %686 = vmatpush1.bf16.msra.mxu0 %v564
    %687 = vmatprep.subr.bf16.mxu0 0
    %688 = vmatpush1.bf16.msra.mxu0 %v565
    %689 = vmatprep.subr.bf16.mxu0 0
    %690 = vmatpush1.bf16.msra.mxu0 %v566
    %691 = vmatprep.subr.bf16.mxu0 0
    %692 = vmatpush1.bf16.msra.mxu0 %v567
    %693 = vmatprep.subr.bf16.mxu0 0
    %694 = vmatpush1.bf16.msra.mxu0 %v568
    %695 = vmatprep.subr.bf16.mxu0 0
    %696 = vmatpush1.bf16.msra.mxu0 %v569
    %697 = vmatprep.subr.bf16.mxu0 0
    %698 = vmatpush1.bf16.msra.mxu0 %v570
    %699 = vmatprep.subr.bf16.mxu0 0
    %700 = vmatpush1.bf16.msra.mxu0 %v571
    %701 = vmatprep.subr.bf16.mxu0 0
    %702 = vmatpush1.bf16.msra.mxu0 %v572
    %703 = vmatprep.subr.bf16.mxu0 0
    %704 = vmatpush1.bf16.msra.mxu0 %v573
    %705 = vmatprep.subr.bf16.mxu0 0
    %706 = vmatpush1.bf16.msra.mxu0 %v574
    %707 = vmatprep.subr.bf16.mxu0 0
    %708 = vmatpush1.bf16.msra.mxu0 %v575
    %709 = vmatprep.subr.bf16.mxu0 0
    %710 = vmatpush1.bf16.msra.mxu0 %v576
    %711 = vmatprep.subr.bf16.mxu0 0
    %712 = vmatpush1.bf16.msra.mxu0 %v577
    %713 = vmatprep.subr.bf16.mxu0 0
    %714 = vmatpush1.bf16.msra.mxu0 %v578
    %715 = vmatprep.mubr.bf16.mxu0 %v250
    %716 = vmatmul.mubr.bf16.gmra.mrb[0].mxu0 %v249
    %v717 = vpop.f32.mrb[0].mxu0
    %v718 = vadd.f32 %v678, %v717
    %v719 = vpop.f32.mrb[0].mxu0
    %v720 = vpop.f32.mrb[0].mxu0
    %v721 = vpop.f32.mrb[0].mxu0
    %722 = vdwg.mxu0
    %723 = vmatprep.subr.bf16.mxu0 0
    %724 = vmatpush1.bf16.msra.mxu0 %v579
    %725 = vmatprep.subr.bf16.mxu0 0
    %726 = vmatpush1.bf16.msra.mxu0 %v580
    %727 = vmatprep.subr.bf16.mxu0 0
    %728 = vmatpush1.bf16.msra.mxu0 %v581
    %729 = vmatprep.subr.bf16.mxu0 0
    %730 = vmatpush1.bf16.msra.mxu0 %v582
    %731 = vmatprep.subr.bf16.mxu0 0
    %732 = vmatpush1.bf16.msra.mxu0 %v583
    %733 = vmatprep.subr.bf16.mxu0 0
    %734 = vmatpush1.bf16.msra.mxu0 %v584
    %735 = vmatprep.subr.bf16.mxu0 0
    %736 = vmatpush1.bf16.msra.mxu0 %v585
    %737 = vmatprep.subr.bf16.mxu0 0
    %738 = vmatpush1.bf16.msra.mxu0 %v586
    %739 = vmatprep.subr.bf16.mxu0 0
    %740 = vmatpush1.bf16.msra.mxu0 %v587
    %741 = vmatprep.subr.bf16.mxu0 0
    %742 = vmatpush1.bf16.msra.mxu0 %v588
    %743 = vmatprep.subr.bf16.mxu0 0
    %744 = vmatpush1.bf16.msra.mxu0 %v589
    %745 = vmatprep.subr.bf16.mxu0 0
    %746 = vmatpush1.bf16.msra.mxu0 %v590
    %747 = vmatprep.subr.bf16.mxu0 0
    %748 = vmatpush1.bf16.msra.mxu0 %v591
    %749 = vmatprep.subr.bf16.mxu0 0
    %750 = vmatpush1.bf16.msra.mxu0 %v592
    %751 = vmatprep.subr.bf16.mxu0 0
    %752 = vmatpush1.bf16.msra.mxu0 %v593
    %753 = vmatprep.subr.bf16.mxu0 0
    %754 = vmatpush1.bf16.msra.mxu0 %v594
    %755 = vmatprep.mubr.bf16.mxu0 %v252
    %756 = vmatmul.mubr.bf16.gmra.mrb[0].mxu0 %v251
    %v757 = vpop.f32.mrb[0].mxu0
    %v758 = vadd.f32 %v718, %v757
    %v759 = vpop.f32.mrb[0].mxu0
    %v760 = vpop.f32.mrb[0].mxu0
    %v761 = vpop.f32.mrb[0].mxu0
    %762 = vdwg.mxu0
    %763 = vst [vmem:[#allocation7] sm:$0xff] %v758
    // Predicated region
    $region22: #{sat_predictor_forward.1} parent=1 // pred_check
      _
    $region23: #{sat_predictor_forward.1} parent=1 // pred_check_branch
      %765 = sbr.rel (0) target = $region25
    $region24: #{sat_predictor_forward.1} parent=1 // pred_region
      %s767 = ssub.s32 128, 128
      %768 = vsyncadd [#allocation4], %s767
      %s770 = sshll.u32 [#allocation7], 4
      %s771 = int_to_ptr.vmem [resolvable:$true] %s770
      %773 = dma.vmem_to_hbm [thread:$0]  %s771, 128, %s3, [#allocation4]
    $region25: #{sat_predictor_forward.1} parent=1 // pred_fallthru
      _
    // Predicated region
    $region26: #{sat_predictor_forward.1} parent=1 // pred_check
      _
    $region27: #{sat_predictor_forward.1} parent=1 // pred_check_branch
      %775 = sbr.rel (0) target = $region29
    $region28: #{sat_predictor_forward.1} parent=1 // pred_region
      %776 = dma.done [#allocation4], 128
    $region29: #{sat_predictor_forward.1} parent=1 // pred_fallthru
      _
    %777 = vsyncpa [#allocation3], 1
    %778 = vsyncpa [#allocation6], 1
    %779 = vsyncpa [#allocation4], 1

</llo_original>
